<compile_context>
chip_gen: v7x
topology: tpu7x:2x2x1
jax: 0.10.0
libtpu: 0.0.40
codegen_flags: <defaults>
</compile_context>

<pallas_src>
import jax
import jax.numpy as jnp
from jax.experimental import pallas as pl
from jax.experimental.pallas import tpu as pltpu


def _round_up(x, m):
    return -(-x // m) * m


def _attention_kernel(x_ref, w_ref, b_ref, ctx_ref, wts_ref):
    # x_ref:   (TB, T, H)  block of batch rows, native input dtype
    # w_ref:   (1, H)      linear weight row (VMEM, f32)
    # b_ref:   (1,)        linear bias (SMEM scalar, f32)
    # ctx_ref: (TB, H)     context output
    # wts_ref: (TB, T)     attention weights (lane-dense; reshaped in wrapper)
    needs_cast = x_ref.dtype != jnp.float32

    w = w_ref[...].astype(jnp.float32)[None, :, :]            # (1, 1, H)
    b = b_ref[0]                                              # scalar

    # scores = tanh(<x, w> + b) over H — VPU multiply + lane reduce (no MXU matvec)
    x = x_ref[...].astype(jnp.float32)                        # (TB, T, H)
    s = jnp.tanh(jnp.sum(x * w, axis=-1) + b)                 # (TB, T)

    # softmax over the sequence axis (lane axis here)
    m = jnp.max(s, axis=-1, keepdims=True)                    # (TB, 1)
    e = jnp.exp(s - m)                                        # (TB, T)
    denom = jnp.sum(e, axis=-1, keepdims=True)                # (TB, 1)
    # exact reciprocal so returned weights match the reference to 1e-5
    p = e * pl.reciprocal(denom, approx=False)                # (TB, T)
    wts_ref[...] = p.astype(wts_ref.dtype)

    # context = sum_t p[:, t] * x[:, t, :]  — VPU multiply + reduce over T.
    # Re-read x for sub-32-bit inputs so the f32 copy is not live across the
    # whole body (halves peak VMEM for bf16 inputs); f32 inputs read once.
    x2 = x_ref[...].astype(jnp.float32) if needs_cast else x  # (TB, T, H)
    ctx = jnp.sum(p[:, :, None] * x2, axis=1)                 # (TB, H)
    ctx_ref[...] = ctx.astype(ctx_ref.dtype)


def attention_forward(lstm_output, weight, bias):
    """lstm_output: (B, T, H); weight: (1, H) (PyTorch Linear layout); bias: (1,)."""
    B, T, H = lstm_output.shape
    in_dtype = lstm_output.dtype
    itemsize = jnp.dtype(in_dtype).itemsize

    # --- generation-aware VMEM budget (128 MiB on v5e/v6e, 64 MiB/TC on v7x) ---
    try:
        info = pltpu.get_tpu_info()
        vmem_cap = getattr(info, "vmem_capacity_bytes", None) or (64 * 1024 * 1024)
    except Exception:
        vmem_cap = 64 * 1024 * 1024                    # conservative (v7x per-TC)
    vmem_limit = min(int(vmem_cap * 0.75), 100 * 1024 * 1024)

    # --- real per-batch-row VMEM footprint: (8,128)-padded tiles, native dtype
    #     plus the in-kernel f32 copies/intermediates, plus output tiles.
    t_sub = _round_up(T, 8)
    h_lane = _round_up(H, 128)
    t_lane = _round_up(T, 128)
    row_native = t_sub * h_lane * itemsize             # x tile, native dtype
    row_f32 = t_sub * h_lane * 4                       # f32 copy / weighted product
    row_out = 2 * (h_lane + t_lane) * 4                # ctx + wts tiles (double-buffered)
    row_cost = 2 * row_native + 2 * row_f32 + row_out  # 2x = double-buffered input DMA

    budget = int(vmem_limit * 0.7)
    tb = budget // max(1, row_cost)
    tb = max(8, (tb // 8) * 8)                         # multiple of 8 (sublane), >= 8

    # Ensure the grid has >= 2 steps when B allows it (megacore on v7x).
    half = _round_up(-(-B // 2), 8)
    tb = min(tb, max(8, half))

    # If even the minimal 8-row block exceeds the budget, open the limit up
    # toward physical capacity (T-streaming fallback is a TODO above).
    if tb * row_cost > budget:
        vmem_limit = min(int(vmem_cap * 0.9), max(vmem_limit, tb * row_cost + (1 << 20)))

    num_blocks = pl.cdiv(B, tb)                        # ragged last block is masked by Pallas

    w_row = weight.reshape(1, H).astype(jnp.float32)   # (1, H)
    b_vec = bias.reshape(1).astype(jnp.float32)        # (1,)

    context, weights = pl.pallas_call(
        _attention_kernel,
        out_shape=(
            jax.ShapeDtypeStruct((B, H), in_dtype),
            jax.ShapeDtypeStruct((B, T), in_dtype),
        ),
        grid_spec=pltpu.PrefetchScalarGridSpec(
            num_scalar_prefetch=0,
            grid=(num_blocks,),
            in_specs=[
                pl.BlockSpec((tb, T, H), lambda i: (i, 0, 0)),             # x block
                pl.BlockSpec((1, H), lambda i: (0, 0)),                    # weight row
                pl.BlockSpec(memory_space=pltpu.MemorySpace.SMEM),         # bias scalar
            ],
            out_specs=[
                pl.BlockSpec((tb, H), lambda i: (i, 0)),                   # context
                pl.BlockSpec((tb, T), lambda i: (i, 0)),                   # weights (lane-dense)
            ],
        ),
        compiler_params=pltpu.CompilerParams(
            dimension_semantics=("parallel",),
            vmem_limit_bytes=int(vmem_limit),
        ),
    )(lstm_output, w_row, b_vec)

    weights = weights.reshape(B, T, 1)
    return context, weights


def _reference(lstm_output, weight, bias):
    # pure-JAX reference mirroring the PyTorch module
    s = jnp.tanh(jnp.einsum("bth,oh->bto", lstm_output, weight) + bias)  # (B, T, 1)
    p = jax.nn.softmax(s, axis=1)
    ctx = jnp.sum(p * lstm_output, axis=1)
    return ctx, p


if __name__ == "__main__":
    key = jax.random.PRNGKey(0)
    kx, kw, kb = jax.random.split(key, 3)

    B, T, H = 2, 8, 32
    x = jax.random.normal(kx, (B, T, H), dtype=jnp.float32)
    # nn.Linear(hidden_dim, 1): weight shape (1, H), bias shape (1,)
    bound = 1.0 / (H ** 0.5)
    w = jax.random.uniform(kw, (1, H), minval=-bound, maxval=bound, dtype=jnp.float32)
    b = jax.random.uniform(kb, (1,), minval=-bound, maxval=bound, dtype=jnp.float32)

    ctx, wts = attention_forward(x, w, b)
    jax.block_until_ready((ctx, wts))

    ctx_ref, wts_ref = _reference(x, w, b)
    assert jnp.allclose(ctx, ctx_ref, atol=1e-5, rtol=1e-5)
    assert jnp.allclose(wts, wts_ref, atol=1e-5, rtol=1e-5)

    print("KERNEL_OK")
</pallas_src>

<mosaic_0001>
module attributes {stable_mosaic.version = 11 : i64} {
  func.func @_attention_kernel(%arg0: i32, %arg1: memref<8x8x32xf32, #tpu.memory_space<vmem>>, %arg2: memref<1x32xf32, #tpu.memory_space<vmem>>, %arg3: memref<1xf32, #tpu.memory_space<smem>>, %arg4: memref<8x32xf32, #tpu.memory_space<vmem>>, %arg5: memref<8x8xf32, #tpu.memory_space<vmem>>) attributes {dimension_semantics = [#tpu.dimension_semantics<parallel>], iteration_bounds = array<i64: 1>, scalar_prefetch = 0 : i64, scratch_operands = 0 : i64, tpu.core_type = #tpu.core_type<tc>, window_params = [{transform_indices = @transform_0, window_bounds = array<i64: 8, 8, 32>}, {pipeline_mode = #tpu.pipeline_mode<synchronous>, transform_indices = @transform_1, window_bounds = array<i64: 1, 32>}, {transform_indices = @transform_2, window_bounds = array<i64: 1>}, {transform_indices = @transform_3, window_bounds = array<i64: 8, 32>}, {transform_indices = @transform_4, window_bounds = array<i64: 8, 8>}]} {
    %c0 = arith.constant 0 : index
    %c0_0 = arith.constant 0 : index
    %0 = vector.load %arg2[%c0, %c0_0] : memref<1x32xf32, #tpu.memory_space<vmem>>, vector<1x32xf32>
    %1 = vector.shape_cast %0 : vector<1x32xf32> to vector<1x1x32xf32>
    %c0_1 = arith.constant 0 : index
    %2 = memref.load %arg3[%c0_1] : memref<1xf32, #tpu.memory_space<smem>>
    %c0_2 = arith.constant 0 : index
    %c0_3 = arith.constant 0 : index
    %c0_4 = arith.constant 0 : index
    %3 = vector.load %arg1[%c0_2, %c0_3, %c0_4] : memref<8x8x32xf32, #tpu.memory_space<vmem>>, vector<8x8x32xf32>
    %4 = vector.broadcast %1 : vector<1x1x32xf32> to vector<8x8x32xf32>
    %5 = arith.mulf %3, %4 : vector<8x8x32xf32>
    %cst = arith.constant dense<0.000000e+00> : vector<8x8xf32>
    %6 = vector.multi_reduction <add>, %5, %cst [2] : vector<8x8x32xf32> to vector<8x8xf32>
    %7 = vector.broadcast %2 : f32 to vector<8x8xf32>
    %8 = arith.addf %6, %7 : vector<8x8xf32>
    %9 = math.tanh %8 : vector<8x8xf32>
    %cst_5 = arith.constant dense<0xFF800000> : vector<8xf32>
    %10 = vector.multi_reduction <maximumf>, %9, %cst_5 [1] : vector<8x8xf32> to vector<8xf32>
    %11 = vector.shape_cast %10 : vector<8xf32> to vector<8x1xf32>
    %12 = vector.broadcast %11 : vector<8x1xf32> to vector<8x8xf32>
    %13 = arith.subf %9, %12 : vector<8x8xf32>
    %14 = math.exp %13 : vector<8x8xf32>
    %cst_6 = arith.constant dense<0.000000e+00> : vector<8xf32>
    %15 = vector.multi_reduction <add>, %14, %cst_6 [1] : vector<8x8xf32> to vector<8xf32>
    %16 = vector.shape_cast %15 : vector<8xf32> to vector<8x1xf32>
    %17 = tpu.reciprocal %16 : vector<8x1xf32> -> vector<8x1xf32>
    %18 = vector.broadcast %17 : vector<8x1xf32> to vector<8x8xf32>
    %19 = arith.mulf %14, %18 : vector<8x8xf32>
    %c0_7 = arith.constant 0 : index
    %c0_8 = arith.constant 0 : index
    %20 = vector.load %arg5[%c0_7, %c0_8] : memref<8x8xf32, #tpu.memory_space<vmem>>, vector<8x8xf32>
    tpu.vector_store %arg5[%c0_7, %c0_8], %19 {strides = array<i32>} : memref<8x8xf32, #tpu.memory_space<vmem>>, vector<8x8xf32>,
    %21 = vector.shape_cast %19 : vector<8x8xf32> to vector<8x8x1xf32>
    %22 = vector.broadcast %21 : vector<8x8x1xf32> to vector<8x8x32xf32>
    %23 = arith.mulf %22, %3 : vector<8x8x32xf32>
    %cst_9 = arith.constant dense<0.000000e+00> : vector<8x32xf32>
    %24 = vector.multi_reduction <add>, %23, %cst_9 [1] : vector<8x8x32xf32> to vector<8x32xf32>
    %c0_10 = arith.constant 0 : index
    %c0_11 = arith.constant 0 : index
    %25 = vector.load %arg4[%c0_10, %c0_11] : memref<8x32xf32, #tpu.memory_space<vmem>>, vector<8x32xf32>
    tpu.vector_store %arg4[%c0_10, %c0_11], %24 {strides = array<i32>} : memref<8x32xf32, #tpu.memory_space<vmem>>, vector<8x32xf32>,
    return
  }
  func.func @transform_0(%arg0: i32) -> (i32, i32, i32) {
    %c0_i32 = arith.constant 0 : i32
    %c0_i32_0 = arith.constant 0 : i32
    %c0_i32_1 = arith.constant 0 : i32
    return %arg0, %c0_i32, %c0_i32_0 : i32, i32, i32
  }
  func.func @transform_1(%arg0: i32) -> (i32, i32) {
    %c0_i32 = arith.constant 0 : i32
    %c0_i32_0 = arith.constant 0 : i32
    %c0_i32_1 = arith.constant 0 : i32
    return %c0_i32, %c0_i32_0 : i32, i32
  }
  func.func @transform_2(%arg0: i32) -> i32 {
    %c0_i32 = arith.constant 0 : i32
    %c0_i32_0 = arith.constant 0 : i32
    return %c0_i32 : i32
  }
  func.func @transform_3(%arg0: i32) -> (i32, i32) {
    %c0_i32 = arith.constant 0 : i32
    %c0_i32_0 = arith.constant 0 : i32
    return %arg0, %c0_i32 : i32, i32
  }
  func.func @transform_4(%arg0: i32) -> (i32, i32) {
    %c0_i32 = arith.constant 0 : i32
    %c0_i32_0 = arith.constant 0 : i32
    return %arg0, %c0_i32 : i32, i32
  }
}

</mosaic_0001>

<llo_original>
// kernel: tpu_custom_call.1
$region0: #{tpu_custom_call.1}
  #allocation0 [shape = 'u32[]', space=smem, size = 0x4, offset = 0x4, fixed_abs, tag = 'smem constant byte address 0x4 - core index']
  #allocation1 [shape = 'u32[144,128]{1,0:T(1,128)}', space=vmem, size = 0x12000, scoped, tag = 'internal scratch']
  #allocation2 [shape = 'f32[1]{0:T(128)S(6)}', space=smem, size = 0x200, scoped, tag = 'scoped memory for tpu_custom_call.1']
  %s0 = inlined_call_operand.hbm [shape: f32[2,8,32], index: 0, kind: input, shape index: {}]
  %s1 = inlined_call_operand.vmem [shape: f32[1,32], index: 1, kind: input, shape index: {}]
  %s2 = inlined_call_operand.<no memory space> [shape: f32[1], index: 2, kind: input, shape index: {}]
  %s3 = inlined_call_operand.hbm [shape: f32[2,32], index: 3, kind: output, shape index: {0}]
  %s4 = inlined_call_operand.hbm [shape: f32[2,8], index: 4, kind: output, shape index: {1}]
  %5 = xla_tuple %s3, %s4
  %s6 = sld [smem:[#allocation0]]
  $region34: #{tpu_custom_call.1} parent=0
    _
  %s8 = ssub.s32 1, %s6
  %s9 = scalar_select 0, %s8, %s6
  %10 = sst [smem:[#allocation2]] %s2
  $region1: #{tpu_custom_call.1} parent=0
    #allocation3 [shape = 'u8[32768]{0}', space=vmem, size = 0x8000, scoped, tag = 'input window, operand 0, single buffered']
    #allocation4 [shape = 's32[1]{0}', space=sflag, size = 0x4, scoped, tag = 'scoped memory for tpu_custom_call.1']
    #allocation5 [shape = 's32[1]{0}', space=sflag, size = 0x4, scoped, tag = 'scoped memory for tpu_custom_call.1']
    #allocation6 [shape = 'u8[4096]{0}', space=vmem, size = 0x1000, scoped, tag = 'output window, operand 0, single buffered']
    #allocation7 [shape = 'u8[4096]{0}', space=vmem, size = 0x1000, scoped, tag = 'output window, operand 1, single buffered']
    #allocation8 [shape = 's32[1]{0}', space=sflag, size = 0x4, scoped, tag = 'scoped memory for tpu_custom_call.1']
    %11 = vsyncpa [#allocation4], 0
    %12 = vsyncpa [#allocation5], 0
    %13 = vsyncpa [#allocation8], 0
    // Predicated region
    $region2: #{tpu_custom_call.1} parent=1 // pred_check
      _
    $region3: #{tpu_custom_call.1} parent=1 // pred_check_branch
      %15 = sbr.rel (0) target = $region5
    $region4: #{tpu_custom_call.1} parent=1 // pred_region
      %s17 = ssub.s32 1024, 256
      %18 = vsyncadd [#allocation4], %s17
      %s19 = sshll.u32 [#allocation3], 4
      %s20 = int_to_ptr.vmem [resolvable:$true] %s19
      %25 = dma.hbm_to_vmem [thread:$0]  %s0, 256, %s20, [#allocation4], 128, 128, 8
    $region5: #{tpu_custom_call.1} parent=1 // pred_fallthru
      _
    // Predicated region
    $region6: #{tpu_custom_call.1} parent=1 // pred_check
      _
    $region7: #{tpu_custom_call.1} parent=1 // pred_check_branch
      %27 = sbr.rel (0) target = $region9
    $region8: #{tpu_custom_call.1} parent=1 // pred_region
      _
    $region9: #{tpu_custom_call.1} parent=1 // pred_fallthru
      _
    // Predicated region
    $region10: #{tpu_custom_call.1} parent=1 // pred_check
      _
    $region11: #{tpu_custom_call.1} parent=1 // pred_check_branch
      %29 = sbr.rel (0) target = $region13
    $region12: #{tpu_custom_call.1} parent=1 // pred_region
      _
    $region13: #{tpu_custom_call.1} parent=1 // pred_fallthru
      _
    // Predicated region
    $region14: #{tpu_custom_call.1} parent=1 // pred_check
      _
    $region15: #{tpu_custom_call.1} parent=1 // pred_check_branch
      %31 = sbr.rel (0) target = $region17
    $region16: #{tpu_custom_call.1} parent=1 // pred_region
      %32 = dma.done [#allocation4], 1024
    $region17: #{tpu_custom_call.1} parent=1 // pred_fallthru
      _
    %v33 = vld [vmem:[%s1] sm:$0x1]
    %s34 = sld [smem:[#allocation2]]
    %v35 = vld [vmem:[#allocation3] sm:$0xff]
    %v36 = vld [vmem:[#allocation3 + $0x8] sm:$0xff]
    %v37 = vld [vmem:[#allocation3 + $0x10] sm:$0xff]
    %v38 = vld [vmem:[#allocation3 + $0x18] sm:$0xff]
    %v39 = vld [vmem:[#allocation3 + $0x20] sm:$0xff]
    %v40 = vld [vmem:[#allocation3 + $0x28] sm:$0xff]
    %v41 = vld [vmem:[#allocation3 + $0x30] sm:$0xff]
    %v42 = vld [vmem:[#allocation3 + $0x38] sm:$0xff]
    %v44 = vlaneseq
    %v45 = vshrl.u32 %v44, 7
    %v46 = vsub.s32 0, %v45
    %v47 = vrot.slane %v33, %v46
    %v49 = vmul.f32 %v35, %v47
    %v50 = vmul.f32 %v36, %v47
    %v51 = vmul.f32 %v37, %v47
    %v52 = vmul.f32 %v38, %v47
    %v53 = vmul.f32 %v39, %v47
    %v54 = vmul.f32 %v40, %v47
    %v55 = vmul.f32 %v41, %v47
    %v56 = vmul.f32 %v42, %v47
    %vm57 = vcmask 261120
    %v58 = vsel %vm57, %v49, 0.0
    %59 = vadd.xlane.f32.xlu0 %v58
    %v60 = vpop.xlane.xlu0 %59
    %v61 = vsel %vm57, %v50, 0.0
    %62 = vadd.xlane.f32.xlu0 %v61
    %v63 = vpop.xlane.xlu0 %62
    %v64 = vsel %vm57, %v51, 0.0
    %65 = vadd.xlane.f32.xlu0 %v64
    %v66 = vpop.xlane.xlu0 %65
    %v67 = vsel %vm57, %v52, 0.0
    %68 = vadd.xlane.f32.xlu0 %v67
    %v69 = vpop.xlane.xlu0 %68
    %v70 = vsel %vm57, %v53, 0.0
    %71 = vadd.xlane.f32.xlu0 %v70
    %v72 = vpop.xlane.xlu0 %71
    %v73 = vsel %vm57, %v54, 0.0
    %74 = vadd.xlane.f32.xlu0 %v73
    %v75 = vpop.xlane.xlu0 %74
    %v76 = vsel %vm57, %v55, 0.0
    %77 = vadd.xlane.f32.xlu0 %v76
    %v78 = vpop.xlane.xlu0 %77
    %v79 = vsel %vm57, %v56, 0.0
    %80 = vadd.xlane.f32.xlu0 %v79
    %v81 = vpop.xlane.xlu0 %80
    %v82 = vstv %s34
    %v83 = vadd.f32 %v60, %v82
    %v84 = vadd.f32 %v63, %v82
    %v85 = vadd.f32 %v66, %v82
    %v86 = vadd.f32 %v69, %v82
    %v87 = vadd.f32 %v72, %v82
    %v88 = vadd.f32 %v75, %v82
    %v89 = vadd.f32 %v78, %v82
    %v90 = vadd.f32 %v81, %v82
    %v91 = vtanh.pop %v83
    %v92 = vtanh.pop %v84
    %v93 = vtanh.pop %v85
    %v94 = vtanh.pop %v86
    %v95 = vtanh.pop %v87
    %v96 = vtanh.pop %v88
    %v97 = vtanh.pop %v89
    %v98 = vtanh.pop %v90
    %v107 = vlaneseq
    %v108 = vand.u32 %v107, 127
    %v109 = vlaneseq
    %v110 = vshrl.u32 %v109, 7
    %v111 = vsub.s32 %v108, %v110
    %v112 = vrot.slane %v91, %v111
    %v113 = vlaneseq
    %v114 = vshrl.u32 %v113, 7
    %v115 = vsub.s32 %v108, %v114
    %v116 = vrot.slane %v92, %v115
    %v117 = vlaneseq
    %v118 = vshrl.u32 %v117, 7
    %v119 = vsub.s32 %v108, %v118
    %v120 = vrot.slane %v93, %v119
    %v121 = vlaneseq
    %v122 = vshrl.u32 %v121, 7
    %v123 = vsub.s32 %v108, %v122
    %v124 = vrot.slane %v94, %v123
    %v125 = vlaneseq
    %v126 = vshrl.u32 %v125, 7
    %v127 = vsub.s32 %v108, %v126
    %v128 = vrot.slane %v95, %v127
    %v129 = vlaneseq
    %v130 = vshrl.u32 %v129, 7
    %v131 = vsub.s32 %v108, %v130
    %v132 = vrot.slane %v96, %v131
    %v133 = vlaneseq
    %v134 = vshrl.u32 %v133, 7
    %v135 = vsub.s32 %v108, %v134
    %v136 = vrot.slane %v97, %v135
    %v137 = vlaneseq
    %v138 = vshrl.u32 %v137, 7
    %v139 = vsub.s32 %v108, %v138
    %v140 = vrot.slane %v98, %v139
    %vm141 = vcmask 1041409
    %v142 = vsel %vm141, %v116, %v112
    %vm143 = vcmask 1042434
    %v144 = vsel %vm143, %v120, %v142
    %vm145 = vcmask 1043459
    %v146 = vsel %vm145, %v124, %v144
    %vm147 = vcmask 1044484
    %v148 = vsel %vm147, %v128, %v146
    %vm149 = vcmask 1045509
    %v150 = vsel %vm149, %v132, %v148
    %vm151 = vcmask 1046534
    %v152 = vsel %vm151, %v136, %v150
    %vm153 = vcmask 1047559
    %v154 = vsel %vm153, %v140, %v152
    %vm156 = vcmask 64512
    %v157 = vsel %vm156, %v154, -inf
    %158 = vmax.xlane.f32.xlu0 %v157
    %v159 = vpop.xlane.xlu0 %158
    %v161 = vlaneseq
    %v162 = vshrl.u32 %v161, 7
    %v163 = vsub.s32 0, %v162
    %v164 = vrot.slane %v159, %v163
    %v165 = vlaneseq
    %v166 = vshrl.u32 %v165, 7
    %v167 = vsub.s32 1, %v166
    %v168 = vrot.slane %v159, %v167
    %v169 = vlaneseq
    %v170 = vshrl.u32 %v169, 7
    %v171 = vsub.s32 2, %v170
    %v172 = vrot.slane %v159, %v171
    %v173 = vlaneseq
    %v174 = vshrl.u32 %v173, 7
    %v175 = vsub.s32 3, %v174
    %v176 = vrot.slane %v159, %v175
    %v177 = vlaneseq
    %v178 = vshrl.u32 %v177, 7
    %v179 = vsub.s32 4, %v178
    %v180 = vrot.slane %v159, %v179
    %v181 = vlaneseq
    %v182 = vshrl.u32 %v181, 7
    %v183 = vsub.s32 5, %v182
    %v184 = vrot.slane %v159, %v183
    %v185 = vlaneseq
    %v186 = vshrl.u32 %v185, 7
    %v187 = vsub.s32 6, %v186
    %v188 = vrot.slane %v159, %v187
    %v189 = vlaneseq
    %v190 = vshrl.u32 %v189, 7
    %v191 = vsub.s32 7, %v190
    %v192 = vrot.slane %v159, %v191
    %v201 = vsub.f32 %v91, %v164
    %v202 = vsub.f32 %v92, %v168
    %v203 = vsub.f32 %v93, %v172
    %v204 = vsub.f32 %v94, %v176
    %v205 = vsub.f32 %v95, %v180
    %v206 = vsub.f32 %v96, %v184
    %v207 = vsub.f32 %v97, %v188
    %v208 = vsub.f32 %v98, %v192
    %v209 = vmul.f32 %v201, 1.442695
    %v210 = vpow.pop %v209
    %v211 = vmul.f32 %v202, 1.442695
    %v212 = vpow.pop %v211
    %v213 = vmul.f32 %v203, 1.442695
    %v214 = vpow.pop %v213
    %v215 = vmul.f32 %v204, 1.442695
    %v216 = vpow.pop %v215
    %v217 = vmul.f32 %v205, 1.442695
    %v218 = vpow.pop %v217
    %v219 = vmul.f32 %v206, 1.442695
    %v220 = vpow.pop %v219
    %v221 = vmul.f32 %v207, 1.442695
    %v222 = vpow.pop %v221
    %v223 = vmul.f32 %v208, 1.442695
    %v224 = vpow.pop %v223
    %233 = vset.pattern.permute.xlu0 0
    %234 = vperm.xlu0 %233, %v210
    %v235 = vpop.permute.xlu0 %234
    %236 = vset.pattern.permute.xlu0 0
    %237 = vperm.xlu0 %236, %v212
    %v238 = vpop.permute.xlu0 %237
    %239 = vset.pattern.permute.xlu0 0
    %240 = vperm.xlu0 %239, %v214
    %v241 = vpop.permute.xlu0 %240
    %242 = vset.pattern.permute.xlu0 0
    %243 = vperm.xlu0 %242, %v216
    %v244 = vpop.permute.xlu0 %243
    %245 = vset.pattern.permute.xlu0 0
    %246 = vperm.xlu0 %245, %v218
    %v247 = vpop.permute.xlu0 %246
    %248 = vset.pattern.permute.xlu0 0
    %249 = vperm.xlu0 %248, %v220
    %v250 = vpop.permute.xlu0 %249
    %251 = vset.pattern.permute.xlu0 0
    %252 = vperm.xlu0 %251, %v222
    %v253 = vpop.permute.xlu0 %252
    %254 = vset.pattern.permute.xlu0 0
    %255 = vperm.xlu0 %254, %v224
    %v256 = vpop.permute.xlu0 %255
    %v257 = vlaneseq
    %v258 = vshrl.u32 %v257, 7
    %v259 = vsub.s32 %v108, %v258
    %v260 = vrot.slane %v235, %v259
    %v261 = vlaneseq
    %v262 = vshrl.u32 %v261, 7
    %v263 = vsub.s32 %v108, %v262
    %v264 = vrot.slane %v238, %v263
    %v265 = vlaneseq
    %v266 = vshrl.u32 %v265, 7
    %v267 = vsub.s32 %v108, %v266
    %v268 = vrot.slane %v241, %v267
    %v269 = vlaneseq
    %v270 = vshrl.u32 %v269, 7
    %v271 = vsub.s32 %v108, %v270
    %v272 = vrot.slane %v244, %v271
    %v273 = vlaneseq
    %v274 = vshrl.u32 %v273, 7
    %v275 = vsub.s32 %v108, %v274
    %v276 = vrot.slane %v247, %v275
    %v277 = vlaneseq
    %v278 = vshrl.u32 %v277, 7
    %v279 = vsub.s32 %v108, %v278
    %v280 = vrot.slane %v250, %v279
    %v281 = vlaneseq
    %v282 = vshrl.u32 %v281, 7
    %v283 = vsub.s32 %v108, %v282
    %v284 = vrot.slane %v253, %v283
    %v285 = vlaneseq
    %v286 = vshrl.u32 %v285, 7
    %v287 = vsub.s32 %v108, %v286
    %v288 = vrot.slane %v256, %v287
    %v289 = vsel %vm141, %v264, %v260
    %v290 = vsel %vm143, %v268, %v289
    %v291 = vsel %vm145, %v272, %v290
    %v292 = vsel %vm147, %v276, %v291
    %v293 = vsel %vm149, %v280, %v292
    %v294 = vsel %vm151, %v284, %v293
    %v295 = vsel %vm153, %v288, %v294
    %v297 = vsel %vm156, %v295, 0.0
    %298 = vadd.xlane.f32.xlu0 %v297
    %v299 = vpop.xlane.xlu0 %298
    %v300 = vrcp.pop %v299
    %v302 = vlaneseq
    %v303 = vshrl.u32 %v302, 7
    %v304 = vsub.s32 0, %v303
    %v305 = vrot.slane %v300, %v304
    %v306 = vlaneseq
    %v307 = vshrl.u32 %v306, 7
    %v308 = vsub.s32 1, %v307
    %v309 = vrot.slane %v300, %v308
    %v310 = vlaneseq
    %v311 = vshrl.u32 %v310, 7
    %v312 = vsub.s32 2, %v311
    %v313 = vrot.slane %v300, %v312
    %v314 = vlaneseq
    %v315 = vshrl.u32 %v314, 7
    %v316 = vsub.s32 3, %v315
    %v317 = vrot.slane %v300, %v316
    %v318 = vlaneseq
    %v319 = vshrl.u32 %v318, 7
    %v320 = vsub.s32 4, %v319
    %v321 = vrot.slane %v300, %v320
    %v322 = vlaneseq
    %v323 = vshrl.u32 %v322, 7
    %v324 = vsub.s32 5, %v323
    %v325 = vrot.slane %v300, %v324
    %v326 = vlaneseq
    %v327 = vshrl.u32 %v326, 7
    %v328 = vsub.s32 6, %v327
    %v329 = vrot.slane %v300, %v328
    %v330 = vlaneseq
    %v331 = vshrl.u32 %v330, 7
    %v332 = vsub.s32 7, %v331
    %v333 = vrot.slane %v300, %v332
    %v342 = vmul.f32 %v210, %v305
    %v343 = vmul.f32 %v212, %v309
    %v344 = vmul.f32 %v214, %v313
    %v345 = vmul.f32 %v216, %v317
    %v346 = vmul.f32 %v218, %v321
    %v347 = vmul.f32 %v220, %v325
    %v348 = vmul.f32 %v222, %v329
    %v349 = vmul.f32 %v224, %v333
    %358 = vset.pattern.permute.xlu0 0
    %359 = vperm.xlu0 %358, %v342
    %v360 = vpop.permute.xlu0 %359
    %361 = vset.pattern.permute.xlu0 0
    %362 = vperm.xlu0 %361, %v343
    %v363 = vpop.permute.xlu0 %362
    %364 = vset.pattern.permute.xlu0 0
    %365 = vperm.xlu0 %364, %v344
    %v366 = vpop.permute.xlu0 %365
    %367 = vset.pattern.permute.xlu0 0
    %368 = vperm.xlu0 %367, %v345
    %v369 = vpop.permute.xlu0 %368
    %370 = vset.pattern.permute.xlu0 0
    %371 = vperm.xlu0 %370, %v346
    %v372 = vpop.permute.xlu0 %371
    %373 = vset.pattern.permute.xlu0 0
    %374 = vperm.xlu0 %373, %v347
    %v375 = vpop.permute.xlu0 %374
    %376 = vset.pattern.permute.xlu0 0
    %377 = vperm.xlu0 %376, %v348
    %v378 = vpop.permute.xlu0 %377
    %379 = vset.pattern.permute.xlu0 0
    %380 = vperm.xlu0 %379, %v349
    %v381 = vpop.permute.xlu0 %380
    %v382 = vlaneseq
    %v383 = vshrl.u32 %v382, 7
    %v384 = vsub.s32 %v108, %v383
    %v385 = vrot.slane %v360, %v384
    %v386 = vlaneseq
    %v387 = vshrl.u32 %v386, 7
    %v388 = vsub.s32 %v108, %v387
    %v389 = vrot.slane %v363, %v388
    %v390 = vlaneseq
    %v391 = vshrl.u32 %v390, 7
    %v392 = vsub.s32 %v108, %v391
    %v393 = vrot.slane %v366, %v392
    %v394 = vlaneseq
    %v395 = vshrl.u32 %v394, 7
    %v396 = vsub.s32 %v108, %v395
    %v397 = vrot.slane %v369, %v396
    %v398 = vlaneseq
    %v399 = vshrl.u32 %v398, 7
    %v400 = vsub.s32 %v108, %v399
    %v401 = vrot.slane %v372, %v400
    %v402 = vlaneseq
    %v403 = vshrl.u32 %v402, 7
    %v404 = vsub.s32 %v108, %v403
    %v405 = vrot.slane %v375, %v404
    %v406 = vlaneseq
    %v407 = vshrl.u32 %v406, 7
    %v408 = vsub.s32 %v108, %v407
    %v409 = vrot.slane %v378, %v408
    %v410 = vlaneseq
    %v411 = vshrl.u32 %v410, 7
    %v412 = vsub.s32 %v108, %v411
    %v413 = vrot.slane %v381, %v412
    %v414 = vsel %vm141, %v389, %v385
    %v415 = vsel %vm143, %v393, %v414
    %v416 = vsel %vm145, %v397, %v415
    %v417 = vsel %vm147, %v401, %v416
    %v418 = vsel %vm149, %v405, %v417
    %v419 = vsel %vm151, %v409, %v418
    %v420 = vsel %vm153, %v413, %v419
    %422 = vst.msk [vmem:[#allocation7] sm:$0xff] %vm156, %v420
    %v431 = vmul.f32 %v360, %v35
    %v432 = vmul.f32 %v363, %v36
    %v433 = vmul.f32 %v366, %v37
    %v434 = vmul.f32 %v369, %v38
    %v435 = vmul.f32 %v372, %v39
    %v436 = vmul.f32 %v375, %v40
    %v437 = vmul.f32 %v378, %v41
    %v438 = vmul.f32 %v381, %v42
    %v439 = vsel %vm57, %v431, 0.0
    %v440 = vrot.slane %v439, 4
    %v441 = vadd.f32 %v439, %v440
    %v442 = vrot.slane %v441, 2
    %v443 = vadd.f32 %v441, %v442
    %v444 = vrot.slane %v443, 1
    %v445 = vadd.f32 %v443, %v444
    %v446 = vsel %vm57, %v432, 0.0
    %v447 = vrot.slane %v446, 4
    %v448 = vadd.f32 %v446, %v447
    %v449 = vrot.slane %v448, 2
    %v450 = vadd.f32 %v448, %v449
    %v451 = vrot.slane %v450, 1
    %v452 = vadd.f32 %v450, %v451
    %v453 = vsel %vm57, %v433, 0.0
    %v454 = vrot.slane %v453, 4
    %v455 = vadd.f32 %v453, %v454
    %v456 = vrot.slane %v455, 2
    %v457 = vadd.f32 %v455, %v456
    %v458 = vrot.slane %v457, 1
    %v459 = vadd.f32 %v457, %v458
    %v460 = vsel %vm57, %v434, 0.0
    %v461 = vrot.slane %v460, 4
    %v462 = vadd.f32 %v460, %v461
    %v463 = vrot.slane %v462, 2
    %v464 = vadd.f32 %v462, %v463
    %v465 = vrot.slane %v464, 1
    %v466 = vadd.f32 %v464, %v465
    %v467 = vsel %vm57, %v435, 0.0
    %v468 = vrot.slane %v467, 4
    %v469 = vadd.f32 %v467, %v468
    %v470 = vrot.slane %v469, 2
    %v471 = vadd.f32 %v469, %v470
    %v472 = vrot.slane %v471, 1
    %v473 = vadd.f32 %v471, %v472
    %v474 = vsel %vm57, %v436, 0.0
    %v475 = vrot.slane %v474, 4
    %v476 = vadd.f32 %v474, %v475
    %v477 = vrot.slane %v476, 2
    %v478 = vadd.f32 %v476, %v477
    %v479 = vrot.slane %v478, 1
    %v480 = vadd.f32 %v478, %v479
    %v481 = vsel %vm57, %v437, 0.0
    %v482 = vrot.slane %v481, 4
    %v483 = vadd.f32 %v481, %v482
    %v484 = vrot.slane %v483, 2
    %v485 = vadd.f32 %v483, %v484
    %v486 = vrot.slane %v485, 1
    %v487 = vadd.f32 %v485, %v486
    %v488 = vsel %vm57, %v438, 0.0
    %v489 = vrot.slane %v488, 4
    %v490 = vadd.f32 %v488, %v489
    %v491 = vrot.slane %v490, 2
    %v492 = vadd.f32 %v490, %v491
    %v493 = vrot.slane %v492, 1
    %v494 = vadd.f32 %v492, %v493
    %v503 = vsel %vm141, %v452, %v445
    %v504 = vsel %vm143, %v459, %v503
    %v505 = vsel %vm145, %v466, %v504
    %v506 = vsel %vm147, %v473, %v505
    %v507 = vsel %vm149, %v480, %v506
    %v508 = vsel %vm151, %v487, %v507
    %v509 = vsel %vm153, %v494, %v508
    %511 = vst.msk [vmem:[#allocation6] sm:$0xff] %vm57, %v509
    // Predicated region
    $region18: #{tpu_custom_call.1} parent=1 // pred_check
      _
    $region19: #{tpu_custom_call.1} parent=1 // pred_check_branch
      %513 = sbr.rel (0) target = $region21
    $region20: #{tpu_custom_call.1} parent=1 // pred_region
      %s515 = ssub.s32 128, 32
      %516 = vsyncadd [#allocation5], %s515
      %s517 = sshll.u32 [#allocation6], 4
      %s518 = int_to_ptr.vmem [resolvable:$true] %s517
      %523 = dma.vmem_to_hbm [thread:$0]  %s518, 32, %s3, [#allocation5], 32, 32, 2
    $region21: #{tpu_custom_call.1} parent=1 // pred_fallthru
      _
    // Predicated region
    $region22: #{tpu_custom_call.1} parent=1 // pred_check
      _
    $region23: #{tpu_custom_call.1} parent=1 // pred_check_branch
      %525 = sbr.rel (0) target = $region25
    $region24: #{tpu_custom_call.1} parent=1 // pred_region
      %s527 = ssub.s32 128, 32
      %528 = vsyncadd [#allocation8], %s527
      %s529 = sshll.u32 [#allocation7], 4
      %s530 = int_to_ptr.vmem [resolvable:$true] %s529
      %535 = dma.vmem_to_hbm [thread:$0]  %s530, 32, %s4, [#allocation8], 32, 32, 2
    $region25: #{tpu_custom_call.1} parent=1 // pred_fallthru
      _
    // Predicated region
    $region26: #{tpu_custom_call.1} parent=1 // pred_check
      _
    $region27: #{tpu_custom_call.1} parent=1 // pred_check_branch
      %537 = sbr.rel (0) target = $region29
    $region28: #{tpu_custom_call.1} parent=1 // pred_region
      %538 = dma.done [#allocation5], 128
    $region29: #{tpu_custom_call.1} parent=1 // pred_fallthru
      _
    // Predicated region
    $region30: #{tpu_custom_call.1} parent=1 // pred_check
      _
    $region31: #{tpu_custom_call.1} parent=1 // pred_check_branch
      %540 = sbr.rel (0) target = $region33
    $region32: #{tpu_custom_call.1} parent=1 // pred_region
      %541 = dma.done [#allocation8], 128
    $region33: #{tpu_custom_call.1} parent=1 // pred_fallthru
      _
    %542 = vsyncpa [#allocation4], 1
    %543 = vsyncpa [#allocation5], 1
    %544 = vsyncpa [#allocation8], 1

</llo_original>
